<compile_context>
chip_gen: v7x
topology: tpu7x:2x2x1
jax: 0.10.0
libtpu: 0.0.40
codegen_flags: <defaults>
</compile_context>

<pallas_src>
import jax
import jax.numpy as jnp
from jax import lax
from jax.experimental import pallas as pl
from jax.experimental.pallas import tpu as pltpu


_TILE_ROWS = 1024  # (1024, 128) f32 tile = 512 KiB per buffer


def _quant_round_kernel(x_ref, o_ref):
    x = x_ref[...].astype(jnp.float32) * 255.0
    # jnp.round matches torch.round (round-half-to-even)
    y = jnp.clip(jnp.round(x), 0.0, 255.0)
    o_ref[...] = (y * (1.0 / 255.0)).astype(o_ref.dtype)


def _uniform_pm_half(seed_i32, tile_rows, lanes, tile_index):
    """Per-element U[-0.5, 0.5) from a counter-based hash of the global index.

    Uses only plain VPU integer ops (iota / xor / shift / mul), so it runs on
    TPU and under interpret mode alike, and every tile draws distinct noise
    without per-tile reseeding.
    """
    # TODO(synk): switch to pltpu.prng_seed/prng_random_bits (hardware PRNG)
    # once the execution environment is guaranteed to be real-TPU lowering.
    row = lax.broadcasted_iota(jnp.int32, (tile_rows, lanes), 0)
    col = lax.broadcasted_iota(jnp.int32, (tile_rows, lanes), 1)
    gid = (tile_index * tile_rows + row) * lanes + col           # int32 (wraps ok)
    z = gid.astype(jnp.uint32) + seed_i32.astype(jnp.uint32) * jnp.uint32(0x9E3779B9)
    # lowbias32 finalizer
    z = (z ^ (z >> 16)) * jnp.uint32(0x7FEB352D)
    z = (z ^ (z >> 15)) * jnp.uint32(0x846CA68B)
    z = z ^ (z >> 16)
    u24 = (z & jnp.uint32(0x00FFFFFF)).astype(jnp.int32).astype(jnp.float32)
    return u24 * (1.0 / 16777216.0) - 0.5                        # [-0.5, 0.5)


def _quant_noise_kernel(seed_ref, x_ref, o_ref):
    x = x_ref[...].astype(jnp.float32) * 255.0
    tr, tl = x_ref.shape
    noise = _uniform_pm_half(seed_ref[0], tr, tl, pl.program_id(0))
    y = jnp.clip(x + noise, 0.0, 255.0)
    o_ref[...] = (y * (1.0 / 255.0)).astype(o_ref.dtype)


def quant(x, is_round, seed=0):
    """Pallas equivalent of Quant.forward(x, isRound). `is_round` is a static bool."""
    orig_shape = x.shape
    orig_dtype = x.dtype

    flat = x.reshape(-1)
    n = flat.shape[0]
    pad = (-n) % (8 * 128)          # only the tiny remainder is ever padded
    if pad:
        flat = jnp.pad(flat, (0, pad))
    rows = flat.shape[0] // 128     # multiple of 8
    x2d = flat.reshape(rows, 128)

    tile_rows = min(_TILE_ROWS, rows)
    grid = (pl.cdiv(rows, tile_rows),)
    block = pl.BlockSpec((tile_rows, 128), lambda i: (i, 0))
    cparams = pltpu.CompilerParams(dimension_semantics=("parallel",))
    out_sds = jax.ShapeDtypeStruct((rows, 128), orig_dtype)

    if is_round:
        out2d = pl.pallas_call(
            _quant_round_kernel,
            out_shape=out_sds,
            grid=grid,
            in_specs=[block],
            out_specs=block,
            compiler_params=cparams,
        )(x2d)
    else:
        seed_arr = jnp.asarray([seed], dtype=jnp.int32)
        out2d = pl.pallas_call(
            _quant_noise_kernel,
            out_shape=out_sds,
            grid=grid,
            in_specs=[
                pl.BlockSpec(memory_space=pltpu.SMEM),  # seed scalar
                block,                                   # x tiles
            ],
            out_specs=block,
            compiler_params=cparams,
        )(seed_arr, x2d)

    out_flat = out2d.reshape(-1)
    if pad:
        out_flat = out_flat[:n]
    return out_flat.reshape(orig_shape)


if __name__ == "__main__":
    key = jax.random.PRNGKey(0)
    # NCHW input consistent with how Quant is used on image tensors
    x = jax.random.uniform(key, (2, 4, 16, 16), dtype=jnp.float32)

    # ---- round path (deterministic, check against pure-JAX reference) ----
    y_round = quant(x, is_round=True)
    jax.block_until_ready(y_round)
    ref_round = jnp.clip(jnp.round(x * 255.0), 0.0, 255.0) / 255.0
    assert y_round.shape == x.shape and y_round.dtype == x.dtype
    assert jnp.allclose(y_round, ref_round, atol=1e-6), "round path mismatch"

    # ---- noise path (stochastic: shape / range / bounded perturbation) ----
    y_noise = quant(x, is_round=False, seed=0)
    jax.block_until_ready(y_noise)
    assert y_noise.shape == x.shape and y_noise.dtype == x.dtype
    assert bool(jnp.all(y_noise >= 0.0)) and bool(jnp.all(y_noise <= 1.0))
    # noise is bounded by 0.5/255 before clamping
    assert bool(jnp.all(jnp.abs(y_noise - jnp.clip(x, 0.0, 1.0)) <= (0.5 / 255.0) + 1e-6))
    # deterministic for a fixed seed
    y_noise_again = quant(x, is_round=False, seed=0)
    jax.block_until_ready(y_noise_again)
    assert bool(jnp.all(y_noise == y_noise_again)), "noise path not reproducible"

    print("KERNEL_OK")
</pallas_src>

<mosaic_0001>
module attributes {stable_mosaic.version = 11 : i64} {
  func.func @_quant_round_kernel(%arg0: i32, %arg1: memref<16x128xf32, #tpu.memory_space<vmem>>, %arg2: memref<16x128xf32, #tpu.memory_space<vmem>>) attributes {dimension_semantics = [#tpu.dimension_semantics<parallel>], iteration_bounds = array<i64: 1>, scalar_prefetch = 0 : i64, scratch_operands = 0 : i64, tpu.core_type = #tpu.core_type<tc>, window_params = [{transform_indices = @transform_0, window_bounds = array<i64: 16, 128>}, {transform_indices = @transform_1, window_bounds = array<i64: 16, 128>}]} {
    %c0 = arith.constant 0 : index
    %c0_0 = arith.constant 0 : index
    %0 = vector.load %arg1[%c0, %c0_0] : memref<16x128xf32, #tpu.memory_space<vmem>>, vector<16x128xf32>
    %cst = arith.constant 2.550000e+02 : f32
    %1 = vector.broadcast %cst : f32 to vector<16x128xf32>
    %2 = arith.mulf %0, %1 : vector<16x128xf32>
    %3 = math.roundeven %2 : vector<16x128xf32>
    %cst_1 = arith.constant 0.000000e+00 : f32
    %cst_2 = arith.constant 2.550000e+02 : f32
    %4 = vector.broadcast %cst_1 : f32 to vector<16x128xf32>
    %5 = arith.maximumf %4, %3 : vector<16x128xf32>
    %6 = vector.broadcast %cst_2 : f32 to vector<16x128xf32>
    %7 = arith.minimumf %6, %5 : vector<16x128xf32>
    %cst_3 = arith.constant 0.00392156886 : f32
    %8 = vector.broadcast %cst_3 : f32 to vector<16x128xf32>
    %9 = arith.mulf %7, %8 : vector<16x128xf32>
    %c0_4 = arith.constant 0 : index
    %c0_5 = arith.constant 0 : index
    %10 = vector.load %arg2[%c0_4, %c0_5] : memref<16x128xf32, #tpu.memory_space<vmem>>, vector<16x128xf32>
    tpu.vector_store %arg2[%c0_4, %c0_5], %9 {strides = array<i32>} : memref<16x128xf32, #tpu.memory_space<vmem>>, vector<16x128xf32>,
    return
  }
  func.func @transform_0(%arg0: i32) -> (i32, i32) {
    %c0_i32 = arith.constant 0 : i32
    %c0_i32_0 = arith.constant 0 : i32
    return %arg0, %c0_i32 : i32, i32
  }
  func.func @transform_1(%arg0: i32) -> (i32, i32) {
    %c0_i32 = arith.constant 0 : i32
    %c0_i32_0 = arith.constant 0 : i32
    return %arg0, %c0_i32 : i32, i32
  }
}

</mosaic_0001>

<llo_original>
// kernel: tpu_custom_call.1
$region0: #{tpu_custom_call.1}
  #allocation0 [shape = 'u32[]', space=smem, size = 0x4, offset = 0x4, fixed_abs, tag = 'smem constant byte address 0x4 - core index']
  #allocation1 [shape = 'u32[144,128]{1,0:T(1,128)}', space=vmem, size = 0x12000, scoped, tag = 'internal scratch']
  %s0 = inlined_call_operand.hbm [shape: f32[16,128], index: 0, kind: input, shape index: {}]
  %s1 = inlined_call_operand.hbm [shape: f32[16,128], index: 1, kind: output, shape index: {}]
  %s2 = sld [smem:[#allocation0]]
  $region18: #{tpu_custom_call.1} parent=0
    _
  %s4 = ssub.s32 1, %s2
  %s5 = scalar_select 0, %s4, %s2
  $region1: #{tpu_custom_call.1} parent=0
    #allocation2 [shape = 'u8[8192]{0}', space=vmem, size = 0x2000, scoped, tag = 'input window, operand 0, single buffered']
    #allocation3 [shape = 's32[1]{0}', space=sflag, size = 0x4, scoped, tag = 'scoped memory for tpu_custom_call.1']
    #allocation4 [shape = 's32[1]{0}', space=sflag, size = 0x4, scoped, tag = 'scoped memory for tpu_custom_call.1']
    #allocation5 [shape = 'u8[8192]{0}', space=vmem, size = 0x2000, scoped, tag = 'output window, operand 0, single buffered']
    %6 = vsyncpa [#allocation3], 0
    %7 = vsyncpa [#allocation4], 0
    // Predicated region
    $region2: #{tpu_custom_call.1} parent=1 // pred_check
      _
    $region3: #{tpu_custom_call.1} parent=1 // pred_check_branch
      %9 = sbr.rel (0) target = $region5
    $region4: #{tpu_custom_call.1} parent=1 // pred_region
      %s11 = ssub.s32 256, 256
      %12 = vsyncadd [#allocation3], %s11
      %s13 = sshll.u32 [#allocation2], 4
      %s14 = int_to_ptr.vmem [resolvable:$true] %s13
      %19 = dma.hbm_to_vmem [thread:$0]  %s0, 256, %s14, [#allocation3], 128, 128, 8
    $region5: #{tpu_custom_call.1} parent=1 // pred_fallthru
      _
    // Predicated region
    $region6: #{tpu_custom_call.1} parent=1 // pred_check
      _
    $region7: #{tpu_custom_call.1} parent=1 // pred_check_branch
      %21 = sbr.rel (0) target = $region9
    $region8: #{tpu_custom_call.1} parent=1 // pred_region
      %22 = dma.done [#allocation3], 256
    $region9: #{tpu_custom_call.1} parent=1 // pred_fallthru
      _
    %v23 = vld [vmem:[#allocation2] sm:$0xff]
    %v24 = vld [vmem:[#allocation2 + $0x8] sm:$0xff]
    %v25 = vmul.f32 %v23, 255.0
    %v26 = vmul.f32 %v24, 255.0
    %v27 = vround.ne.pseudo %v25
    %v28 = vround.ne.pseudo %v26
    %v29 = vmax.f32 %v27, 0.0
    %v30 = vmax.f32 %v28, 0.0
    %v31 = vmin.f32 %v29, 255.0
    %v32 = vmin.f32 %v30, 255.0
    %v33 = vmul.f32 %v31, 0.003921569
    %v34 = vmul.f32 %v32, 0.003921569
    %35 = vst [vmem:[#allocation5] sm:$0xff] %v33
    %36 = vst [vmem:[#allocation5 + $0x8] sm:$0xff] %v34
    // Predicated region
    $region10: #{tpu_custom_call.1} parent=1 // pred_check
      _
    $region11: #{tpu_custom_call.1} parent=1 // pred_check_branch
      %38 = sbr.rel (0) target = $region13
    $region12: #{tpu_custom_call.1} parent=1 // pred_region
      %s40 = ssub.s32 256, 256
      %41 = vsyncadd [#allocation4], %s40
      %s42 = sshll.u32 [#allocation5], 4
      %s43 = int_to_ptr.vmem [resolvable:$true] %s42
      %48 = dma.vmem_to_hbm [thread:$0]  %s43, 256, %s1, [#allocation4], 128, 128, 8
    $region13: #{tpu_custom_call.1} parent=1 // pred_fallthru
      _
    // Predicated region
    $region14: #{tpu_custom_call.1} parent=1 // pred_check
      _
    $region15: #{tpu_custom_call.1} parent=1 // pred_check_branch
      %50 = sbr.rel (0) target = $region17
    $region16: #{tpu_custom_call.1} parent=1 // pred_region
      %51 = dma.done [#allocation4], 256
    $region17: #{tpu_custom_call.1} parent=1 // pred_fallthru
      _
    %52 = vsyncpa [#allocation3], 1
    %53 = vsyncpa [#allocation4], 1

</llo_original>
